<compile_context>
chip_gen: v6e
topology: v6e:2x2x1
jax: 0.10.0
libtpu: 0.0.40
codegen_flags: <defaults>
</compile_context>

<pallas_src>
import functools
import numpy as np

import jax
import jax.numpy as jnp
from jax.experimental import pallas as pl
from jax.experimental.pallas import tpu as pltpu

P = 13703077      # RzLinear.P
R = 4             # RzLinear.R

# ROBE-Z hash tile: each (HASH_BK, HASH_BN) block of the virtual weight is a
# contiguous HASH_BK*HASH_BN chunk of the compressed weight, aligned to
# HASH_BN elements.  NOTE: this TPU-friendly tiling (one packed (16,128) bf16
# VMEM tile per hash block) intentionally differs from the reference Triton
# kernel's block sizes; the NumPy reference below uses the exact same
# definition, so kernel and reference agree.
HASH_BK = 16
HASH_BN = 128

# Matmul tiling caps (per-call tile sizes are clamped to the problem size).
BM_MAX = 256     # rows of x per grid step (matches the 256-wide MXU on v6e/v7x)
BN_MAX = 512     # output columns per grid step (lane-dense stores, fewer x re-reads)


def generate_random_numbers(seed: int) -> np.ndarray:
    # TODO(synk): torch.manual_seed's RNG stream is not reproducible in
    # JAX/NumPy; we use a deterministic NumPy stream with the same
    # post-processing as RzLinear._generate_random_numbers.
    rng = np.random.RandomState(seed)
    x = rng.randint(0, P, size=(R - 1,)).astype(np.int64)
    x = np.where(x > 4096, x // 4096, x)
    x = x + x % 2
    return np.concatenate([np.array([P], dtype=np.int64), x]).astype(np.int32)


def compute_row_offsets(random_numbers, k_pad: int, n_pad: int,
                        num_rows: int) -> np.ndarray:
    """Hash row offsets into the (num_rows, HASH_BN) compressed-weight view for
    every (hash column block, k block) of the virtual weight, flattened 1-D as
    offs[jh * k_blocks + kk] (flat / long axis last to avoid SMEM padding)."""
    r0, r1, r2, r3 = (int(v) for v in random_numbers)
    k_blocks = k_pad // HASH_BK
    n_hash_cols = n_pad // HASH_BN
    rng = num_rows - HASH_BK + 1
    offs = np.zeros((n_hash_cols * k_blocks,), dtype=np.int64)
    for jh in range(n_hash_cols):
        for kk in range(k_blocks):
            offs[jh * k_blocks + kk] = ((kk * r3 + jh * r2 + r1) % r0) % rng
    return offs.astype(np.int32)


def rz_linear_kernel(offs_ref, x_ref, hw_ref, bias_ref, out_ref, w_strip,
                     *, k_blocks: int, nb_sub: int):
    j = pl.program_id(0)          # output-column (N) block index
    i = pl.program_id(1)          # row (M) block index

    @pl.when(i == 0)
    def _decompress_strip():
        # Build column block j's (K_pad, BN) bf16 virtual-weight strip from the
        # VMEM-resident compressed table.  Strip offsets are static
        # (Python-unrolled, (16,128)-tile aligned); only the hashed source row
        # is dynamic.  Runs once per column block, amortized over all i.
        # TODO(synk): for very large K (thousands of unrolled tiles) switch to
        # a K-reduction grid axis with a f32 VMEM accumulator instead.
        for b in range(nb_sub):
            base = (j * nb_sub + b) * k_blocks
            for kk in range(k_blocks):
                row = offs_ref[base + kk]
                tile = hw_ref[pl.ds(row, HASH_BK), :]       # f32 (16, 128)
                w_strip[kk * HASH_BK:(kk + 1) * HASH_BK,
                        b * HASH_BN:(b + 1) * HASH_BN] = tile.astype(jnp.bfloat16)

    acc = jnp.dot(x_ref[...],                               # bf16 (BM, K_pad)
                  w_strip[...],                             # bf16 (K_pad, BN)
                  preferred_element_type=jnp.float32)
    out_ref[...] = (acc + bias_ref[...]).astype(out_ref.dtype)


def _round_up(v: int, m: int) -> int:
    return (v + m - 1) // m * m


def rz_linear_forward(x, hashed_weight, bias, random_numbers, output_dim: int):
    assert x.ndim >= 2
    K = x.shape[-1]
    x2d = x.reshape(-1, K)            # (N, *, input_dim) -> (M, K)
    M = x2d.shape[0]
    N = output_dim

    # Compressed table, viewed as (num_rows, HASH_BN), staged resident in VMEM.
    # Kept in f32 so dynamic-row (unaligned sublane) loads are cheap/safe; the
    # per-tile bf16 conversion happens once per column block at decompress.
    # TODO(synk): if H*4 bytes ever exceeds the VMEM budget, fall back to HBM
    # hash-tile DMAs (previous kernel revision).
    H = int(hashed_weight.shape[0])
    num_rows = H // HASH_BN
    assert num_rows >= HASH_BK, "compressed weight must hold at least one hash tile"
    num_rows_pad = _round_up(num_rows, 8)
    hw2d = hashed_weight[: num_rows * HASH_BN].astype(jnp.float32)
    hw2d = hw2d.reshape(num_rows, HASH_BN)
    hw2d = jnp.pad(hw2d, ((0, num_rows_pad - num_rows), (0, 0)))

    # Tile sizes clamped to the (padded) problem size.
    BM = min(BM_MAX, _round_up(M, 8))
    BN = min(BN_MAX, _round_up(N, HASH_BN))

    # Pad to the matmul tiling; K is lane-aligned (multiple of 128).  Padded
    # rows/cols are sliced off the output; padded x columns are zero so the
    # garbage virtual-weight rows they hit contribute nothing.
    K_pad = _round_up(K, 128)
    M_pad = _round_up(M, BM)
    N_pad = _round_up(N, BN)
    x2d = jnp.pad(x2d.astype(jnp.bfloat16), ((0, M_pad - M), (0, K_pad - K)))
    bias_p = jnp.pad(bias.astype(jnp.float32), (0, N_pad - N)).reshape(1, N_pad)

    offsets = jnp.asarray(
        compute_row_offsets(random_numbers, K_pad, N_pad, num_rows))

    n_blocks = N_pad // BN
    m_blocks = M_pad // BM
    k_blocks = K_pad // HASH_BK
    nb_sub = BN // HASH_BN
    kernel = functools.partial(rz_linear_kernel,
                               k_blocks=k_blocks, nb_sub=nb_sub)

    # Explicit VMEM budget (strip + double-buffered x/out/table/bias) + headroom.
    vmem_bytes = (K_pad * BN * 2                      # bf16 strip (single buffer)
                  + 2 * BM * K_pad * 2                # x double buffer (bf16)
                  + 2 * BM * BN * 4                   # out double buffer (f32)
                  + 2 * num_rows_pad * HASH_BN * 4    # resident compressed table
                  + 2 * BN * 4)                       # bias
    vmem_limit = min(max(int(vmem_bytes * 1.25) + (2 << 20), 16 << 20), 128 << 20)

    cost = pl.CostEstimate(
        flops=2 * M_pad * K_pad * N_pad,
        transcendentals=0,
        bytes_accessed=(n_blocks * M_pad * K_pad * 2    # x re-streamed per column block
                        + num_rows_pad * HASH_BN * 4    # compressed table (once)
                        + M_pad * N_pad * 4             # output write
                        + N_pad * 4))                   # bias

    out = pl.pallas_call(
        kernel,
        out_shape=jax.ShapeDtypeStruct((M_pad, N_pad), jnp.float32),
        grid_spec=pltpu.PrefetchScalarGridSpec(
            num_scalar_prefetch=1,
            grid=(n_blocks, m_blocks),
            in_specs=[
                pl.BlockSpec((BM, K_pad), lambda j, i, offs: (i, 0)),   # x tile
                # Whole compressed table, block index never changes -> fetched
                # once per core and kept resident in VMEM.
                pl.BlockSpec((num_rows_pad, HASH_BN), lambda j, i, offs: (0, 0)),
                pl.BlockSpec((1, BN), lambda j, i, offs: (0, j)),       # bias tile
            ],
            out_specs=pl.BlockSpec((BM, BN), lambda j, i, offs: (i, j)),
            scratch_shapes=[
                pltpu.VMEM((K_pad, BN), jnp.bfloat16),   # decompressed strip
            ],
        ),
        # j is "parallel" (no cross-j state anymore) so v7x's two TensorCores
        # split the column blocks; i stays sequential so the i == 0 decompress
        # is seen before the other row blocks of the same j.
        compiler_params=pltpu.CompilerParams(
            dimension_semantics=("parallel", "arbitrary"),
            vmem_limit_bytes=vmem_limit),
        cost_estimate=cost,
    )(offsets, x2d, hw2d, bias_p)
    return out[:M, :N]


if __name__ == "__main__":
    # Small configuration that still exercises M/N padding and multiple hash
    # column blocks.
    input_dim, output_dim, compress_ratio, seed = 128, 384, 0.0625, 1024
    H = int(input_dim * output_dim * compress_ratio)          # 3072

    # Deterministic parameter init matching RzLinear.__init__ (bias=False =>
    # the bias term contributes zero).
    hashed_weight = jnp.arange(H, dtype=jnp.float32)
    bias = jnp.zeros((output_dim,), dtype=jnp.float32)
    random_numbers = generate_random_numbers(seed)

    # Example input (N, *, input_dim); flattened to (192, 128) inside the wrapper.
    key = jax.random.PRNGKey(0)
    x = jax.random.normal(key, (2, 96, input_dim), dtype=jnp.float32)

    y = rz_linear_forward(x, hashed_weight, bias, random_numbers, output_dim)
    y = jax.block_until_ready(y)

    # Pure NumPy reference: materialize the virtual weight with the same
    # chunk-aligned hash, then a dense matmul.
    num_rows = H // HASH_BN
    K_pad = _round_up(input_dim, 128)
    N_pad_ref = _round_up(output_dim, HASH_BN)
    offs = compute_row_offsets(random_numbers, K_pad, N_pad_ref, num_rows)
    hw_np = np.asarray(hashed_weight)[: num_rows * HASH_BN].reshape(num_rows, HASH_BN)
    k_blocks = input_dim // HASH_BK
    k_blocks_pad = K_pad // HASH_BK
    W = np.zeros((input_dim, output_dim), dtype=np.float32)
    for jh in range(output_dim // HASH_BN):
        for kk in range(k_blocks):
            row = int(offs[jh * k_blocks_pad + kk])
            W[kk * HASH_BK:(kk + 1) * HASH_BK, jh * HASH_BN:(jh + 1) * HASH_BN] = \
                hw_np[row:row + HASH_BK, :]
    ref = np.asarray(x).reshape(-1, input_dim) @ W + np.asarray(bias)[None, :]

    assert y.shape == (x.shape[0] * x.shape[1], output_dim), y.shape
    rel = float(np.max(np.abs(np.asarray(y) - ref)) / max(1.0, np.max(np.abs(ref))))
    assert rel < 2e-2, f"kernel/reference mismatch, rel={rel}"
    print("KERNEL_OK")
</pallas_src>

<mosaic_0001>
module attributes {stable_mosaic.version = 11 : i64} {
  func.func @rz_linear_kernel(%arg0: i32, %arg1: i32, %arg2: memref<24xi32, #tpu.memory_space<smem>>, %arg3: memref<192x128xbf16, #tpu.memory_space<vmem>>, %arg4: memref<24x128xf32, #tpu.memory_space<vmem>>, %arg5: memref<1x384xf32, #tpu.memory_space<vmem>>, %arg6: memref<192x384xf32, #tpu.memory_space<vmem>>, %arg7: memref<128x384xbf16, #tpu.memory_space<vmem>>) attributes {dimension_semantics = [#tpu.dimension_semantics<parallel>, #tpu.dimension_semantics<arbitrary>], iteration_bounds = array<i64: 1, 1>, scalar_prefetch = 1 : i64, scratch_operands = 1 : i64, tpu.core_type = #tpu.core_type<tc>, window_params = [{transform_indices = @transform_0, window_bounds = array<i64: 192, 128>}, {pipeline_mode = #tpu.pipeline_mode<synchronous>, transform_indices = @transform_1, window_bounds = array<i64: 24, 128>}, {transform_indices = @transform_2, window_bounds = array<i64: 1, 384>}, {transform_indices = @transform_3, window_bounds = array<i64: 192, 384>}]} {
    %c0_i32 = arith.constant 0 : i32
    %0 = arith.cmpi eq, %arg1, %c0_i32 : i32
    %1 = arith.extui %0 : i1 to i32
    %c0_i32_0 = arith.constant 0 : i32
    %2 = arith.cmpi ne, %1, %c0_i32_0 : i32
    scf.if %2 {
      %c3_i32 = arith.constant 3 : i32
      %10 = arith.muli %arg0, %c3_i32 : i32
      %c0_i32_8 = arith.constant 0 : i32
      %11 = arith.addi %10, %c0_i32_8 : i32
      %c8_i32 = arith.constant 8 : i32
      %12 = arith.muli %11, %c8_i32 : i32
      %c0_i32_9 = arith.constant 0 : i32
      %13 = arith.addi %12, %c0_i32_9 : i32
      %14 = arith.index_cast %13 : i32 to index
      %15 = memref.load %arg2[%14] : memref<24xi32, #tpu.memory_space<smem>>
      %16 = arith.index_cast %15 : i32 to index
      %c0_10 = arith.constant 0 : index
      %17 = vector.load %arg4[%16, %c0_10] : memref<24x128xf32, #tpu.memory_space<vmem>>, vector<16x128xf32>
      %18 = arith.truncf %17 : vector<16x128xf32> to vector<16x128xbf16>
      %c0_11 = arith.constant 0 : index
      %c0_12 = arith.constant 0 : index
      %19 = vector.load %arg7[%c0_11, %c0_12] : memref<128x384xbf16, #tpu.memory_space<vmem>>, vector<16x128xbf16>
      tpu.vector_store %arg7[%c0_11, %c0_12], %18 {strides = array<i32>} : memref<128x384xbf16, #tpu.memory_space<vmem>>, vector<16x128xbf16>,
      %c1_i32 = arith.constant 1 : i32
      %20 = arith.addi %12, %c1_i32 : i32
      %21 = arith.index_cast %20 : i32 to index
      %22 = memref.load %arg2[%21] : memref<24xi32, #tpu.memory_space<smem>>
      %23 = arith.index_cast %22 : i32 to index
      %c0_13 = arith.constant 0 : index
      %24 = vector.load %arg4[%23, %c0_13] : memref<24x128xf32, #tpu.memory_space<vmem>>, vector<16x128xf32>
      %25 = arith.truncf %24 : vector<16x128xf32> to vector<16x128xbf16>
      %c16 = arith.constant 16 : index
      %c0_14 = arith.constant 0 : index
      %26 = vector.load %arg7[%c16, %c0_14] : memref<128x384xbf16, #tpu.memory_space<vmem>>, vector<16x128xbf16>
      tpu.vector_store %arg7[%c16, %c0_14], %25 {strides = array<i32>} : memref<128x384xbf16, #tpu.memory_space<vmem>>, vector<16x128xbf16>,
      %c2_i32 = arith.constant 2 : i32
      %27 = arith.addi %12, %c2_i32 : i32
      %28 = arith.index_cast %27 : i32 to index
      %29 = memref.load %arg2[%28] : memref<24xi32, #tpu.memory_space<smem>>
      %30 = arith.index_cast %29 : i32 to index
      %c0_15 = arith.constant 0 : index
      %31 = vector.load %arg4[%30, %c0_15] : memref<24x128xf32, #tpu.memory_space<vmem>>, vector<16x128xf32>
      %32 = arith.truncf %31 : vector<16x128xf32> to vector<16x128xbf16>
      %c32 = arith.constant 32 : index
      %c0_16 = arith.constant 0 : index
      %33 = vector.load %arg7[%c32, %c0_16] : memref<128x384xbf16, #tpu.memory_space<vmem>>, vector<16x128xbf16>
      tpu.vector_store %arg7[%c32, %c0_16], %32 {strides = array<i32>} : memref<128x384xbf16, #tpu.memory_space<vmem>>, vector<16x128xbf16>,
      %c3_i32_17 = arith.constant 3 : i32
      %34 = arith.addi %12, %c3_i32_17 : i32
      %35 = arith.index_cast %34 : i32 to index
      %36 = memref.load %arg2[%35] : memref<24xi32, #tpu.memory_space<smem>>
      %37 = arith.index_cast %36 : i32 to index
      %c0_18 = arith.constant 0 : index
      %38 = vector.load %arg4[%37, %c0_18] : memref<24x128xf32, #tpu.memory_space<vmem>>, vector<16x128xf32>
      %39 = arith.truncf %38 : vector<16x128xf32> to vector<16x128xbf16>
      %c48 = arith.constant 48 : index
      %c0_19 = arith.constant 0 : index
      %40 = vector.load %arg7[%c48, %c0_19] : memref<128x384xbf16, #tpu.memory_space<vmem>>, vector<16x128xbf16>
      tpu.vector_store %arg7[%c48, %c0_19], %39 {strides = array<i32>} : memref<128x384xbf16, #tpu.memory_space<vmem>>, vector<16x128xbf16>,
      %c4_i32 = arith.constant 4 : i32
      %41 = arith.addi %12, %c4_i32 : i32
      %42 = arith.index_cast %41 : i32 to index
      %43 = memref.load %arg2[%42] : memref<24xi32, #tpu.memory_space<smem>>
      %44 = arith.index_cast %43 : i32 to index
      %c0_20 = arith.constant 0 : index
      %45 = vector.load %arg4[%44, %c0_20] : memref<24x128xf32, #tpu.memory_space<vmem>>, vector<16x128xf32>
      %46 = arith.truncf %45 : vector<16x128xf32> to vector<16x128xbf16>
      %c64 = arith.constant 64 : index
      %c0_21 = arith.constant 0 : index
      %47 = vector.load %arg7[%c64, %c0_21] : memref<128x384xbf16, #tpu.memory_space<vmem>>, vector<16x128xbf16>
      tpu.vector_store %arg7[%c64, %c0_21], %46 {strides = array<i32>} : memref<128x384xbf16, #tpu.memory_space<vmem>>, vector<16x128xbf16>,
      %c5_i32 = arith.constant 5 : i32
      %48 = arith.addi %12, %c5_i32 : i32
      %49 = arith.index_cast %48 : i32 to index
      %50 = memref.load %arg2[%49] : memref<24xi32, #tpu.memory_space<smem>>
      %51 = arith.index_cast %50 : i32 to index
      %c0_22 = arith.constant 0 : index
      %52 = vector.load %arg4[%51, %c0_22] : memref<24x128xf32, #tpu.memory_space<vmem>>, vector<16x128xf32>
      %53 = arith.truncf %52 : vector<16x128xf32> to vector<16x128xbf16>
      %c80 = arith.constant 80 : index
      %c0_23 = arith.constant 0 : index
      %54 = vector.load %arg7[%c80, %c0_23] : memref<128x384xbf16, #tpu.memory_space<vmem>>, vector<16x128xbf16>
      tpu.vector_store %arg7[%c80, %c0_23], %53 {strides = array<i32>} : memref<128x384xbf16, #tpu.memory_space<vmem>>, vector<16x128xbf16>,
      %c6_i32 = arith.constant 6 : i32
      %55 = arith.addi %12, %c6_i32 : i32
      %56 = arith.index_cast %55 : i32 to index
      %57 = memref.load %arg2[%56] : memref<24xi32, #tpu.memory_space<smem>>
      %58 = arith.index_cast %57 : i32 to index
      %c0_24 = arith.constant 0 : index
      %59 = vector.load %arg4[%58, %c0_24] : memref<24x128xf32, #tpu.memory_space<vmem>>, vector<16x128xf32>
      %60 = arith.truncf %59 : vector<16x128xf32> to vector<16x128xbf16>
      %c96 = arith.constant 96 : index
      %c0_25 = arith.constant 0 : index
      %61 = vector.load %arg7[%c96, %c0_25] : memref<128x384xbf16, #tpu.memory_space<vmem>>, vector<16x128xbf16>
      tpu.vector_store %arg7[%c96, %c0_25], %60 {strides = array<i32>} : memref<128x384xbf16, #tpu.memory_space<vmem>>, vector<16x128xbf16>,
      %c7_i32 = arith.constant 7 : i32
      %62 = arith.addi %12, %c7_i32 : i32
      %63 = arith.index_cast %62 : i32 to index
      %64 = memref.load %arg2[%63] : memref<24xi32, #tpu.memory_space<smem>>
      %65 = arith.index_cast %64 : i32 to index
      %c0_26 = arith.constant 0 : index
      %66 = vector.load %arg4[%65, %c0_26] : memref<24x128xf32, #tpu.memory_space<vmem>>, vector<16x128xf32>
      %67 = arith.truncf %66 : vector<16x128xf32> to vector<16x128xbf16>
      %c112 = arith.constant 112 : index
      %c0_27 = arith.constant 0 : index
      %68 = vector.load %arg7[%c112, %c0_27] : memref<128x384xbf16, #tpu.memory_space<vmem>>, vector<16x128xbf16>
      tpu.vector_store %arg7[%c112, %c0_27], %67 {strides = array<i32>} : memref<128x384xbf16, #tpu.memory_space<vmem>>, vector<16x128xbf16>,
      %c3_i32_28 = arith.constant 3 : i32
      %69 = arith.muli %arg0, %c3_i32_28 : i32
      %c1_i32_29 = arith.constant 1 : i32
      %70 = arith.addi %69, %c1_i32_29 : i32
      %c8_i32_30 = arith.constant 8 : i32
      %71 = arith.muli %70, %c8_i32_30 : i32
      %c0_i32_31 = arith.constant 0 : i32
      %72 = arith.addi %71, %c0_i32_31 : i32
      %73 = arith.index_cast %72 : i32 to index
      %74 = memref.load %arg2[%73] : memref<24xi32, #tpu.memory_space<smem>>
      %75 = arith.index_cast %74 : i32 to index
      %c0_32 = arith.constant 0 : index
      %76 = vector.load %arg4[%75, %c0_32] : memref<24x128xf32, #tpu.memory_space<vmem>>, vector<16x128xf32>
      %77 = arith.truncf %76 : vector<16x128xf32> to vector<16x128xbf16>
      %c0_33 = arith.constant 0 : index
      %c128 = arith.constant 128 : index
      %78 = vector.load %arg7[%c0_33, %c128] : memref<128x384xbf16, #tpu.memory_space<vmem>>, vector<16x128xbf16>
      tpu.vector_store %arg7[%c0_33, %c128], %77 {strides = array<i32>} : memref<128x384xbf16, #tpu.memory_space<vmem>>, vector<16x128xbf16>,
      %c1_i32_34 = arith.constant 1 : i32
      %79 = arith.addi %71, %c1_i32_34 : i32
      %80 = arith.index_cast %79 : i32 to index
      %81 = memref.load %arg2[%80] : memref<24xi32, #tpu.memory_space<smem>>
      %82 = arith.index_cast %81 : i32 to index
      %c0_35 = arith.constant 0 : index
      %83 = vector.load %arg4[%82, %c0_35] : memref<24x128xf32, #tpu.memory_space<vmem>>, vector<16x128xf32>
      %84 = arith.truncf %83 : vector<16x128xf32> to vector<16x128xbf16>
      %c16_36 = arith.constant 16 : index
      %c128_37 = arith.constant 128 : index
      %85 = vector.load %arg7[%c16_36, %c128_37] : memref<128x384xbf16, #tpu.memory_space<vmem>>, vector<16x128xbf16>
      tpu.vector_store %arg7[%c16_36, %c128_37], %84 {strides = array<i32>} : memref<128x384xbf16, #tpu.memory_space<vmem>>, vector<16x128xbf16>,
      %c2_i32_38 = arith.constant 2 : i32
      %86 = arith.addi %71, %c2_i32_38 : i32
      %87 = arith.index_cast %86 : i32 to index
      %88 = memref.load %arg2[%87] : memref<24xi32, #tpu.memory_space<smem>>
      %89 = arith.index_cast %88 : i32 to index
      %c0_39 = arith.constant 0 : index
      %90 = vector.load %arg4[%89, %c0_39] : memref<24x128xf32, #tpu.memory_space<vmem>>, vector<16x128xf32>
      %91 = arith.truncf %90 : vector<16x128xf32> to vector<16x128xbf16>
      %c32_40 = arith.constant 32 : index
      %c128_41 = arith.constant 128 : index
      %92 = vector.load %arg7[%c32_40, %c128_41] : memref<128x384xbf16, #tpu.memory_space<vmem>>, vector<16x128xbf16>
      tpu.vector_store %arg7[%c32_40, %c128_41], %91 {strides = array<i32>} : memref<128x384xbf16, #tpu.memory_space<vmem>>, vector<16x128xbf16>,
      %c3_i32_42 = arith.constant 3 : i32
      %93 = arith.addi %71, %c3_i32_42 : i32
      %94 = arith.index_cast %93 : i32 to index
      %95 = memref.load %arg2[%94] : memref<24xi32, #tpu.memory_space<smem>>
      %96 = arith.index_cast %95 : i32 to index
      %c0_43 = arith.constant 0 : index
      %97 = vector.load %arg4[%96, %c0_43] : memref<24x128xf32, #tpu.memory_space<vmem>>, vector<16x128xf32>
      %98 = arith.truncf %97 : vector<16x128xf32> to vector<16x128xbf16>
      %c48_44 = arith.constant 48 : index
      %c128_45 = arith.constant 128 : index
      %99 = vector.load %arg7[%c48_44, %c128_45] : memref<128x384xbf16, #tpu.memory_space<vmem>>, vector<16x128xbf16>
      tpu.vector_store %arg7[%c48_44, %c128_45], %98 {strides = array<i32>} : memref<128x384xbf16, #tpu.memory_space<vmem>>, vector<16x128xbf16>,
      %c4_i32_46 = arith.constant 4 : i32
      %100 = arith.addi %71, %c4_i32_46 : i32
      %101 = arith.index_cast %100 : i32 to index
      %102 = memref.load %arg2[%101] : memref<24xi32, #tpu.memory_space<smem>>
      %103 = arith.index_cast %102 : i32 to index
      %c0_47 = arith.constant 0 : index
      %104 = vector.load %arg4[%103, %c0_47] : memref<24x128xf32, #tpu.memory_space<vmem>>, vector<16x128xf32>
      %105 = arith.truncf %104 : vector<16x128xf32> to vector<16x128xbf16>
      %c64_48 = arith.constant 64 : index
      %c128_49 = arith.constant 128 : index
      %106 = vector.load %arg7[%c64_48, %c128_49] : memref<128x384xbf16, #tpu.memory_space<vmem>>, vector<16x128xbf16>
      tpu.vector_store %arg7[%c64_48, %c128_49], %105 {strides = array<i32>} : memref<128x384xbf16, #tpu.memory_space<vmem>>, vector<16x128xbf16>,
      %c5_i32_50 = arith.constant 5 : i32
      %107 = arith.addi %71, %c5_i32_50 : i32
      %108 = arith.index_cast %107 : i32 to index
      %109 = memref.load %arg2[%108] : memref<24xi32, #tpu.memory_space<smem>>
      %110 = arith.index_cast %109 : i32 to index
      %c0_51 = arith.constant 0 : index
      %111 = vector.load %arg4[%110, %c0_51] : memref<24x128xf32, #tpu.memory_space<vmem>>, vector<16x128xf32>
      %112 = arith.truncf %111 : vector<16x128xf32> to vector<16x128xbf16>
      %c80_52 = arith.constant 80 : index
      %c128_53 = arith.constant 128 : index
      %113 = vector.load %arg7[%c80_52, %c128_53] : memref<128x384xbf16, #tpu.memory_space<vmem>>, vector<16x128xbf16>
      tpu.vector_store %arg7[%c80_52, %c128_53], %112 {strides = array<i32>} : memref<128x384xbf16, #tpu.memory_space<vmem>>, vector<16x128xbf16>,
      %c6_i32_54 = arith.constant 6 : i32
      %114 = arith.addi %71, %c6_i32_54 : i32
      %115 = arith.index_cast %114 : i32 to index
      %116 = memref.load %arg2[%115] : memref<24xi32, #tpu.memory_space<smem>>
      %117 = arith.index_cast %116 : i32 to index
      %c0_55 = arith.constant 0 : index
      %118 = vector.load %arg4[%117, %c0_55] : memref<24x128xf32, #tpu.memory_space<vmem>>, vector<16x128xf32>
      %119 = arith.truncf %118 : vector<16x128xf32> to vector<16x128xbf16>
      %c96_56 = arith.constant 96 : index
      %c128_57 = arith.constant 128 : index
      %120 = vector.load %arg7[%c96_56, %c128_57] : memref<128x384xbf16, #tpu.memory_space<vmem>>, vector<16x128xbf16>
      tpu.vector_store %arg7[%c96_56, %c128_57], %119 {strides = array<i32>} : memref<128x384xbf16, #tpu.memory_space<vmem>>, vector<16x128xbf16>,
      %c7_i32_58 = arith.constant 7 : i32
      %121 = arith.addi %71, %c7_i32_58 : i32
      %122 = arith.index_cast %121 : i32 to index
      %123 = memref.load %arg2[%122] : memref<24xi32, #tpu.memory_space<smem>>
      %124 = arith.index_cast %123 : i32 to index
      %c0_59 = arith.constant 0 : index
      %125 = vector.load %arg4[%124, %c0_59] : memref<24x128xf32, #tpu.memory_space<vmem>>, vector<16x128xf32>
      %126 = arith.truncf %125 : vector<16x128xf32> to vector<16x128xbf16>
      %c112_60 = arith.constant 112 : index
      %c128_61 = arith.constant 128 : index
      %127 = vector.load %arg7[%c112_60, %c128_61] : memref<128x384xbf16, #tpu.memory_space<vmem>>, vector<16x128xbf16>
      tpu.vector_store %arg7[%c112_60, %c128_61], %126 {strides = array<i32>} : memref<128x384xbf16, #tpu.memory_space<vmem>>, vector<16x128xbf16>,
      %c3_i32_62 = arith.constant 3 : i32
      %128 = arith.muli %arg0, %c3_i32_62 : i32
      %c2_i32_63 = arith.constant 2 : i32
      %129 = arith.addi %128, %c2_i32_63 : i32
      %c8_i32_64 = arith.constant 8 : i32
      %130 = arith.muli %129, %c8_i32_64 : i32
      %c0_i32_65 = arith.constant 0 : i32
      %131 = arith.addi %130, %c0_i32_65 : i32
      %132 = arith.index_cast %131 : i32 to index
      %133 = memref.load %arg2[%132] : memref<24xi32, #tpu.memory_space<smem>>
      %134 = arith.index_cast %133 : i32 to index
      %c0_66 = arith.constant 0 : index
      %135 = vector.load %arg4[%134, %c0_66] : memref<24x128xf32, #tpu.memory_space<vmem>>, vector<16x128xf32>
      %136 = arith.truncf %135 : vector<16x128xf32> to vector<16x128xbf16>
      %c0_67 = arith.constant 0 : index
      %c256 = arith.constant 256 : index
      %137 = vector.load %arg7[%c0_67, %c256] : memref<128x384xbf16, #tpu.memory_space<vmem>>, vector<16x128xbf16>
      tpu.vector_store %arg7[%c0_67, %c256], %136 {strides = array<i32>} : memref<128x384xbf16, #tpu.memory_space<vmem>>, vector<16x128xbf16>,
      %c1_i32_68 = arith.constant 1 : i32
      %138 = arith.addi %130, %c1_i32_68 : i32
      %139 = arith.index_cast %138 : i32 to index
      %140 = memref.load %arg2[%139] : memref<24xi32, #tpu.memory_space<smem>>
      %141 = arith.index_cast %140 : i32 to index
      %c0_69 = arith.constant 0 : index
      %142 = vector.load %arg4[%141, %c0_69] : memref<24x128xf32, #tpu.memory_space<vmem>>, vector<16x128xf32>
      %143 = arith.truncf %142 : vector<16x128xf32> to vector<16x128xbf16>
      %c16_70 = arith.constant 16 : index
      %c256_71 = arith.constant 256 : index
      %144 = vector.load %arg7[%c16_70, %c256_71] : memref<128x384xbf16, #tpu.memory_space<vmem>>, vector<16x128xbf16>
      tpu.vector_store %arg7[%c16_70, %c256_71], %143 {strides = array<i32>} : memref<128x384xbf16, #tpu.memory_space<vmem>>, vector<16x128xbf16>,
      %c2_i32_72 = arith.constant 2 : i32
      %145 = arith.addi %130, %c2_i32_72 : i32
      %146 = arith.index_cast %145 : i32 to index
      %147 = memref.load %arg2[%146] : memref<24xi32, #tpu.memory_space<smem>>
      %148 = arith.index_cast %147 : i32 to index
      %c0_73 = arith.constant 0 : index
      %149 = vector.load %arg4[%148, %c0_73] : memref<24x128xf32, #tpu.memory_space<vmem>>, vector<16x128xf32>
      %150 = arith.truncf %149 : vector<16x128xf32> to vector<16x128xbf16>
      %c32_74 = arith.constant 32 : index
      %c256_75 = arith.constant 256 : index
      %151 = vector.load %arg7[%c32_74, %c256_75] : memref<128x384xbf16, #tpu.memory_space<vmem>>, vector<16x128xbf16>
      tpu.vector_store %arg7[%c32_74, %c256_75], %150 {strides = array<i32>} : memref<128x384xbf16, #tpu.memory_space<vmem>>, vector<16x128xbf16>,
      %c3_i32_76 = arith.constant 3 : i32
      %152 = arith.addi %130, %c3_i32_76 : i32
      %153 = arith.index_cast %152 : i32 to index
      %154 = memref.load %arg2[%153] : memref<24xi32, #tpu.memory_space<smem>>
      %155 = arith.index_cast %154 : i32 to index
      %c0_77 = arith.constant 0 : index
      %156 = vector.load %arg4[%155, %c0_77] : memref<24x128xf32, #tpu.memory_space<vmem>>, vector<16x128xf32>
      %157 = arith.truncf %156 : vector<16x128xf32> to vector<16x128xbf16>
      %c48_78 = arith.constant 48 : index
      %c256_79 = arith.constant 256 : index
      %158 = vector.load %arg7[%c48_78, %c256_79] : memref<128x384xbf16, #tpu.memory_space<vmem>>, vector<16x128xbf16>
      tpu.vector_store %arg7[%c48_78, %c256_79], %157 {strides = array<i32>} : memref<128x384xbf16, #tpu.memory_space<vmem>>, vector<16x128xbf16>,
      %c4_i32_80 = arith.constant 4 : i32
      %159 = arith.addi %130, %c4_i32_80 : i32
      %160 = arith.index_cast %159 : i32 to index
      %161 = memref.load %arg2[%160] : memref<24xi32, #tpu.memory_space<smem>>
      %162 = arith.index_cast %161 : i32 to index
      %c0_81 = arith.constant 0 : index
      %163 = vector.load %arg4[%162, %c0_81] : memref<24x128xf32, #tpu.memory_space<vmem>>, vector<16x128xf32>
      %164 = arith.truncf %163 : vector<16x128xf32> to vector<16x128xbf16>
      %c64_82 = arith.constant 64 : index
      %c256_83 = arith.constant 256 : index
      %165 = vector.load %arg7[%c64_82, %c256_83] : memref<128x384xbf16, #tpu.memory_space<vmem>>, vector<16x128xbf16>
      tpu.vector_store %arg7[%c64_82, %c256_83], %164 {strides = array<i32>} : memref<128x384xbf16, #tpu.memory_space<vmem>>, vector<16x128xbf16>,
      %c5_i32_84 = arith.constant 5 : i32
      %166 = arith.addi %130, %c5_i32_84 : i32
      %167 = arith.index_cast %166 : i32 to index
      %168 = memref.load %arg2[%167] : memref<24xi32, #tpu.memory_space<smem>>
      %169 = arith.index_cast %168 : i32 to index
      %c0_85 = arith.constant 0 : index
      %170 = vector.load %arg4[%169, %c0_85] : memref<24x128xf32, #tpu.memory_space<vmem>>, vector<16x128xf32>
      %171 = arith.truncf %170 : vector<16x128xf32> to vector<16x128xbf16>
      %c80_86 = arith.constant 80 : index
      %c256_87 = arith.constant 256 : index
      %172 = vector.load %arg7[%c80_86, %c256_87] : memref<128x384xbf16, #tpu.memory_space<vmem>>, vector<16x128xbf16>
      tpu.vector_store %arg7[%c80_86, %c256_87], %171 {strides = array<i32>} : memref<128x384xbf16, #tpu.memory_space<vmem>>, vector<16x128xbf16>,
      %c6_i32_88 = arith.constant 6 : i32
      %173 = arith.addi %130, %c6_i32_88 : i32
      %174 = arith.index_cast %173 : i32 to index
      %175 = memref.load %arg2[%174] : memref<24xi32, #tpu.memory_space<smem>>
      %176 = arith.index_cast %175 : i32 to index
      %c0_89 = arith.constant 0 : index
      %177 = vector.load %arg4[%176, %c0_89] : memref<24x128xf32, #tpu.memory_space<vmem>>, vector<16x128xf32>
      %178 = arith.truncf %177 : vector<16x128xf32> to vector<16x128xbf16>
      %c96_90 = arith.constant 96 : index
      %c256_91 = arith.constant 256 : index
      %179 = vector.load %arg7[%c96_90, %c256_91] : memref<128x384xbf16, #tpu.memory_space<vmem>>, vector<16x128xbf16>
      tpu.vector_store %arg7[%c96_90, %c256_91], %178 {strides = array<i32>} : memref<128x384xbf16, #tpu.memory_space<vmem>>, vector<16x128xbf16>,
      %c7_i32_92 = arith.constant 7 : i32
      %180 = arith.addi %130, %c7_i32_92 : i32
      %181 = arith.index_cast %180 : i32 to index
      %182 = memref.load %arg2[%181] : memref<24xi32, #tpu.memory_space<smem>>
      %183 = arith.index_cast %182 : i32 to index
      %c0_93 = arith.constant 0 : index
      %184 = vector.load %arg4[%183, %c0_93] : memref<24x128xf32, #tpu.memory_space<vmem>>, vector<16x128xf32>
      %185 = arith.truncf %184 : vector<16x128xf32> to vector<16x128xbf16>
      %c112_94 = arith.constant 112 : index
      %c256_95 = arith.constant 256 : index
      %186 = vector.load %arg7[%c112_94, %c256_95] : memref<128x384xbf16, #tpu.memory_space<vmem>>, vector<16x128xbf16>
      tpu.vector_store %arg7[%c112_94, %c256_95], %185 {strides = array<i32>} : memref<128x384xbf16, #tpu.memory_space<vmem>>, vector<16x128xbf16>,
    } else {
    }
    %c0 = arith.constant 0 : index
    %c0_1 = arith.constant 0 : index
    %3 = vector.load %arg3[%c0, %c0_1] : memref<192x128xbf16, #tpu.memory_space<vmem>>, vector<192x128xbf16>
    %c0_2 = arith.constant 0 : index
    %c0_3 = arith.constant 0 : index
    %4 = vector.load %arg7[%c0_2, %c0_3] : memref<128x384xbf16, #tpu.memory_space<vmem>>, vector<128x384xbf16>
    %cst = arith.constant dense<0.000000e+00> : vector<192x384xf32>
    %5 = tpu.matmul %3, %4, %cst {dimension_numbers = #tpu.dot_dimension_numbers<[1], [0], [0], [1], [0, 0, 1, 1], [], []>} : vector<192x128xbf16>, vector<128x384xbf16>, vector<192x384xf32> -> vector<192x384xf32>
    %c0_4 = arith.constant 0 : index
    %c0_5 = arith.constant 0 : index
    %6 = vector.load %arg5[%c0_4, %c0_5] : memref<1x384xf32, #tpu.memory_space<vmem>>, vector<1x384xf32>
    %7 = vector.broadcast %6 : vector<1x384xf32> to vector<192x384xf32>
    %8 = arith.addf %5, %7 : vector<192x384xf32>
    %c0_6 = arith.constant 0 : index
    %c0_7 = arith.constant 0 : index
    %9 = vector.load %arg6[%c0_6, %c0_7] : memref<192x384xf32, #tpu.memory_space<vmem>>, vector<192x384xf32>
    tpu.vector_store %arg6[%c0_6, %c0_7], %8 {strides = array<i32>} : memref<192x384xf32, #tpu.memory_space<vmem>>, vector<192x384xf32>,
    return
  }
  func.func @transform_0(%arg0: i32, %arg1: i32, %arg2: memref<24xi32, #tpu.memory_space<smem>>) -> (i32, i32) {
    %c0_i32 = arith.constant 0 : i32
    %c0_i32_0 = arith.constant 0 : i32
    return %arg1, %c0_i32 : i32, i32
  }
  func.func @transform_1(%arg0: i32, %arg1: i32, %arg2: memref<24xi32, #tpu.memory_space<smem>>) -> (i32, i32) {
    %c0_i32 = arith.constant 0 : i32
    %c0_i32_0 = arith.constant 0 : i32
    %c0_i32_1 = arith.constant 0 : i32
    return %c0_i32, %c0_i32_0 : i32, i32
  }
  func.func @transform_2(%arg0: i32, %arg1: i32, %arg2: memref<24xi32, #tpu.memory_space<smem>>) -> (i32, i32) {
    %c0_i32 = arith.constant 0 : i32
    %c0_i32_0 = arith.constant 0 : i32
    return %c0_i32, %arg0 : i32, i32
  }
  func.func @transform_3(%arg0: i32, %arg1: i32, %arg2: memref<24xi32, #tpu.memory_space<smem>>) -> (i32, i32) {
    %c0_i32 = arith.constant 0 : i32
    return %arg1, %arg0 : i32, i32
  }
}

</mosaic_0001>

<llo_original>
// kernel: tpu_custom_call.1
$region0: #{tpu_custom_call.1}
  #allocation0 [shape = 'u32[]', space=smem, size = 0x4, offset = 0x4, fixed_abs, tag = 'smem constant byte address 0x4 - core index']
  #allocation1 [shape = 'u32[144,128]{1,0:T(1,128)}', space=vmem, size = 0x12000, scoped, tag = 'internal scratch']
  #allocation2 [shape = 'bf16[128,384]{1,0:T(8,128)(2,1)}', space=vmem, size = 0x18000, scoped, tag = 'scratch operand']
  #allocation3 [shape = 's32[1]{0}', space=sflag, size = 0x4, scoped, tag = 'scoped memory for tpu_custom_call.1']
  #allocation4 [shape = 'u8[512]{0}', space=smem, size = 0x200, scoped, tag = 'prefetched SMEM operand 0']
  %s0 = inlined_call_operand.hbm [shape: s32[24], index: 0, kind: input, shape index: {}]
  %s1 = inlined_call_operand.hbm [shape: bf16[192,128], index: 1, kind: input, shape index: {}]
  %s2 = inlined_call_operand.hbm [shape: f32[24,128], index: 2, kind: input, shape index: {}]
  %s3 = inlined_call_operand.vmem [shape: f32[1,384], index: 3, kind: input, shape index: {}]
  %s4 = inlined_call_operand.hbm [shape: f32[192,384], index: 4, kind: output, shape index: {}]
  %s5 = sld [smem:[#allocation0]]
  $region34: #{tpu_custom_call.1} parent=0
    _
  %s7 = ssub.s32 1, %s5
  %s8 = scalar_select 0, %s7, %s5
  %10 = dma.hbm_to_smem %s0, 16, [#allocation4], [#allocation3]
  %11 = dma.done [#allocation3], 16
  %12 = sfence
  $region1: #{tpu_custom_call.1} parent=0
    #allocation5 [shape = 'u8[49152]{0}', space=vmem, size = 0xc000, scoped, tag = 'input window, operand 1, single buffered']
    #allocation6 [shape = 's32[1]{0}', space=sflag, size = 0x4, scoped, tag = 'scoped memory for tpu_custom_call.1']
    #allocation7 [shape = 's32[1]{0}', space=sflag, size = 0x4, scoped, tag = 'scoped memory for tpu_custom_call.1']
    #allocation8 [shape = 'u8[12288]{0}', space=vmem, size = 0x3000, scoped, tag = 'input window, operand 2, single buffered']
    #allocation9 [shape = 's32[1]{0}', space=sflag, size = 0x4, scoped, tag = 'scoped memory for tpu_custom_call.1']
    #allocation10 [shape = 'u8[294912]{0}', space=vmem, size = 0x48000, scoped, tag = 'output window, operand 0, single buffered']
    %13 = vsyncpa [#allocation6], 0
    %14 = vsyncpa [#allocation9], 0
    %15 = vsyncpa [#allocation7], 0
    // Predicated region
    $region2: #{tpu_custom_call.1} parent=1 // pred_check
      _
    $region3: #{tpu_custom_call.1} parent=1 // pred_check_branch
      %17 = sbr.rel (0) target = $region5
    $region4: #{tpu_custom_call.1} parent=1 // pred_region
      %s19 = ssub.s32 1536, 1536
      %20 = vsyncadd [#allocation6], %s19
      %s21 = sshll.u32 [#allocation5], 4
      %s22 = int_to_ptr.vmem [resolvable:$true] %s21
      %27 = dma.hbm_to_vmem [thread:$0]  %s1, 1536, %s22, [#allocation6], 64, 64, 4
    $region5: #{tpu_custom_call.1} parent=1 // pred_fallthru
      _
    // Predicated region
    $region6: #{tpu_custom_call.1} parent=1 // pred_check
      _
    $region7: #{tpu_custom_call.1} parent=1 // pred_check_branch
      %29 = sbr.rel (0) target = $region9
    $region8: #{tpu_custom_call.1} parent=1 // pred_region
      %s31 = ssub.s32 384, 384
      %32 = vsyncadd [#allocation9], %s31
      %s33 = sshll.u32 [#allocation8], 4
      %s34 = int_to_ptr.vmem [resolvable:$true] %s33
      %39 = dma.hbm_to_vmem [thread:$0]  %s2, 384, %s34, [#allocation9], 128, 128, 8
    $region9: #{tpu_custom_call.1} parent=1 // pred_fallthru
      _
    // Predicated region
    $region10: #{tpu_custom_call.1} parent=1 // pred_check
      _
    $region11: #{tpu_custom_call.1} parent=1 // pred_check_branch
      %41 = sbr.rel (0) target = $region13
    $region12: #{tpu_custom_call.1} parent=1 // pred_region
      _
    $region13: #{tpu_custom_call.1} parent=1 // pred_fallthru
      _
    // Predicated region
    $region14: #{tpu_custom_call.1} parent=1 // pred_check
      _
    $region15: #{tpu_custom_call.1} parent=1 // pred_check_branch
      %43 = sbr.rel (0) target = $region17
    $region16: #{tpu_custom_call.1} parent=1 // pred_region
      %44 = dma.done [#allocation6], 1536
    $region17: #{tpu_custom_call.1} parent=1 // pred_fallthru
      _
    // Predicated region
    $region18: #{tpu_custom_call.1} parent=1 // pred_check
      _
    $region19: #{tpu_custom_call.1} parent=1 // pred_check_branch
      %46 = sbr.rel (0) target = $region21
    $region20: #{tpu_custom_call.1} parent=1 // pred_region
      %47 = dma.done [#allocation9], 384
    $region21: #{tpu_custom_call.1} parent=1 // pred_fallthru
      _
    %p49 = scmp.eq.s32.totalorder 0, 0
    // Predicated region
    $region22: #{tpu_custom_call.1} parent=1 // pred_check
      %p50 = pneg %p49
    $region23: #{tpu_custom_call.1} parent=1 // pred_check_branch
      %52 = sbr.rel (%p50) target = $region25
    $region24: #{tpu_custom_call.1} parent=1 // pred_region
      %s53 = smul.u32 0, 24
      %s54 = sld [smem:[#allocation4 + %s53]]
      %s55 = scalar_lea.vmem [#allocation8], %s54
      %v56 = vld [vmem:[%s55] sm:$0xff]
      %v57 = vld [vmem:[%s55 + $0x8] sm:$0xff]
      %v58 = vpack.c.bf16 %v57, %v56
      %v60 = vunpack.c.l.b16 %v58
      %v61 = vunpack.c.h.b16 %v58
      %v62 = vpack.c.b16 %v60, %v60
      %v63 = vpack.c.b16 %v61, %v61
      %66 = vst [vmem:[#allocation2] sm:$0xf] %v62
      %67 = vst [vmem:[#allocation2 + $0xc] sm:$0xf] %v63
      %s68 = sadd.s32 %s53, 1
      %s69 = sld [smem:[#allocation4 + %s68]]
      %s70 = scalar_lea.vmem [#allocation8], %s69
      %v71 = vld [vmem:[%s70] sm:$0xff]
      %v72 = vld [vmem:[%s70 + $0x8] sm:$0xff]
      %v73 = vpack.c.bf16 %v72, %v71
      %v75 = vunpack.c.l.b16 %v73
      %v76 = vunpack.c.h.b16 %v73
      %v77 = vpack.c.b16 %v75, %v75
      %v78 = vpack.c.b16 %v76, %v76
      %81 = vst [vmem:[#allocation2 + $0x18] sm:$0xf] %v77
      %82 = vst [vmem:[#allocation2 + $0x24] sm:$0xf] %v78
      %s83 = sadd.s32 %s53, 2
      %s84 = sld [smem:[#allocation4 + %s83]]
      %s85 = scalar_lea.vmem [#allocation8], %s84
      %v86 = vld [vmem:[%s85] sm:$0xff]
      %v87 = vld [vmem:[%s85 + $0x8] sm:$0xff]
      %v88 = vpack.c.bf16 %v87, %v86
      %v90 = vunpack.c.l.b16 %v88
      %v91 = vunpack.c.h.b16 %v88
      %v92 = vpack.c.b16 %v90, %v90
      %v93 = vpack.c.b16 %v91, %v91
      %96 = vst [vmem:[#allocation2 + $0x30] sm:$0xf] %v92
      %97 = vst [vmem:[#allocation2 + $0x3c] sm:$0xf] %v93
      %s98 = sadd.s32 %s53, 3
      %s99 = sld [smem:[#allocation4 + %s98]]
      %s100 = scalar_lea.vmem [#allocation8], %s99
      %v101 = vld [vmem:[%s100] sm:$0xff]
      %v102 = vld [vmem:[%s100 + $0x8] sm:$0xff]
      %v103 = vpack.c.bf16 %v102, %v101
      %v105 = vunpack.c.l.b16 %v103
      %v106 = vunpack.c.h.b16 %v103
      %v107 = vpack.c.b16 %v105, %v105
      %v108 = vpack.c.b16 %v106, %v106
      %111 = vst [vmem:[#allocation2 + $0x48] sm:$0xf] %v107
      %112 = vst [vmem:[#allocation2 + $0x54] sm:$0xf] %v108
      %s113 = sadd.s32 %s53, 4
      %s114 = sld [smem:[#allocation4 + %s113]]
      %s115 = scalar_lea.vmem [#allocation8], %s114
      %v116 = vld [vmem:[%s115] sm:$0xff]
      %v117 = vld [vmem:[%s115 + $0x8] sm:$0xff]
      %v118 = vpack.c.bf16 %v117, %v116
      %v120 = vunpack.c.l.b16 %v118
      %v121 = vunpack.c.h.b16 %v118
      %v122 = vpack.c.b16 %v120, %v120
      %v123 = vpack.c.b16 %v121, %v121
      %126 = vst [vmem:[#allocation2 + $0x60] sm:$0xf] %v122
      %127 = vst [vmem:[#allocation2 + $0x6c] sm:$0xf] %v123
      %s128 = sadd.s32 %s53, 5
      %s129 = sld [smem:[#allocation4 + %s128]]
      %s130 = scalar_lea.vmem [#allocation8], %s129
      %v131 = vld [vmem:[%s130] sm:$0xff]
      %v132 = vld [vmem:[%s130 + $0x8] sm:$0xff]
      %v133 = vpack.c.bf16 %v132, %v131
      %v135 = vunpack.c.l.b16 %v133
      %v136 = vunpack.c.h.b16 %v133
      %v137 = vpack.c.b16 %v135, %v135
      %v138 = vpack.c.b16 %v136, %v136
      %141 = vst [vmem:[#allocation2 + $0x78] sm:$0xf] %v137
      %142 = vst [vmem:[#allocation2 + $0x84] sm:$0xf] %v138
      %s143 = sadd.s32 %s53, 6
      %s144 = sld [smem:[#allocation4 + %s143]]
      %s145 = scalar_lea.vmem [#allocation8], %s144
      %v146 = vld [vmem:[%s145] sm:$0xff]
      %v147 = vld [vmem:[%s145 + $0x8] sm:$0xff]
      %v148 = vpack.c.bf16 %v147, %v146
      %v150 = vunpack.c.l.b16 %v148
      %v151 = vunpack.c.h.b16 %v148
      %v152 = vpack.c.b16 %v150, %v150
      %v153 = vpack.c.b16 %v151, %v151
      %156 = vst [vmem:[#allocation2 + $0x90] sm:$0xf] %v152
      %157 = vst [vmem:[#allocation2 + $0x9c] sm:$0xf] %v153
      %s158 = sadd.s32 %s53, 7
      %s159 = sld [smem:[#allocation4 + %s158]]
      %s160 = scalar_lea.vmem [#allocation8], %s159
      %v161 = vld [vmem:[%s160] sm:$0xff]
      %v162 = vld [vmem:[%s160 + $0x8] sm:$0xff]
      %v163 = vpack.c.bf16 %v162, %v161
      %v165 = vunpack.c.l.b16 %v163
      %v166 = vunpack.c.h.b16 %v163
      %v167 = vpack.c.b16 %v165, %v165
      %v168 = vpack.c.b16 %v166, %v166
      %171 = vst [vmem:[#allocation2 + $0xa8] sm:$0xf] %v167
      %172 = vst [vmem:[#allocation2 + $0xb4] sm:$0xf] %v168
      %s173 = smul.u32 0, 3
      %s174 = sadd.s32 %s173, 1
      %s175 = smul.u32 %s174, 8
      %s176 = sld [smem:[#allocation4 + %s175]]
      %s177 = scalar_lea.vmem [#allocation8], %s176
      %v178 = vld [vmem:[%s177] sm:$0xff]
      %v179 = vld [vmem:[%s177 + $0x8] sm:$0xff]
      %v180 = vpack.c.bf16 %v179, %v178
      %v182 = vunpack.c.l.b16 %v180
      %v183 = vunpack.c.h.b16 %v180
      %v184 = vpack.c.b16 %v182, %v182
      %v185 = vpack.c.b16 %v183, %v183
      %188 = vst [vmem:[#allocation2 + $0x4] sm:$0xf] %v184
      %189 = vst [vmem:[#allocation2 + $0x10] sm:$0xf] %v185
      %s190 = sadd.s32 %s175, 1
      %s191 = sld [smem:[#allocation4 + %s190]]
      %s192 = scalar_lea.vmem [#allocation8], %s191
      %v193 = vld [vmem:[%s192] sm:$0xff]
      %v194 = vld [vmem:[%s192 + $0x8] sm:$0xff]
      %v195 = vpack.c.bf16 %v194, %v193
      %v197 = vunpack.c.l.b16 %v195
      %v198 = vunpack.c.h.b16 %v195
      %v199 = vpack.c.b16 %v197, %v197
      %v200 = vpack.c.b16 %v198, %v198
      %203 = vst [vmem:[#allocation2 + $0x1c] sm:$0xf] %v199
      %204 = vst [vmem:[#allocation2 + $0x28] sm:$0xf] %v200
      %s205 = sadd.s32 %s175, 2
      %s206 = sld [smem:[#allocation4 + %s205]]
      %s207 = scalar_lea.vmem [#allocation8], %s206
      %v208 = vld [vmem:[%s207] sm:$0xff]
      %v209 = vld [vmem:[%s207 + $0x8] sm:$0xff]
      %v210 = vpack.c.bf16 %v209, %v208
      %v212 = vunpack.c.l.b16 %v210
      %v213 = vunpack.c.h.b16 %v210
      %v214 = vpack.c.b16 %v212, %v212
      %v215 = vpack.c.b16 %v213, %v213
      %218 = vst [vmem:[#allocation2 + $0x34] sm:$0xf] %v214
      %219 = vst [vmem:[#allocation2 + $0x40] sm:$0xf] %v215
      %s220 = sadd.s32 %s175, 3
      %s221 = sld [smem:[#allocation4 + %s220]]
      %s222 = scalar_lea.vmem [#allocation8], %s221
      %v223 = vld [vmem:[%s222] sm:$0xff]
      %v224 = vld [vmem:[%s222 + $0x8] sm:$0xff]
      %v225 = vpack.c.bf16 %v224, %v223
      %v227 = vunpack.c.l.b16 %v225
      %v228 = vunpack.c.h.b16 %v225
      %v229 = vpack.c.b16 %v227, %v227
      %v230 = vpack.c.b16 %v228, %v228
      %233 = vst [vmem:[#allocation2 + $0x4c] sm:$0xf] %v229
      %234 = vst [vmem:[#allocation2 + $0x58] sm:$0xf] %v230
      %s235 = sadd.s32 %s175, 4
      %s236 = sld [smem:[#allocation4 + %s235]]
      %s237 = scalar_lea.vmem [#allocation8], %s236
      %v238 = vld [vmem:[%s237] sm:$0xff]
      %v239 = vld [vmem:[%s237 + $0x8] sm:$0xff]
      %v240 = vpack.c.bf16 %v239, %v238
      %v242 = vunpack.c.l.b16 %v240
      %v243 = vunpack.c.h.b16 %v240
      %v244 = vpack.c.b16 %v242, %v242
      %v245 = vpack.c.b16 %v243, %v243
      %248 = vst [vmem:[#allocation2 + $0x64] sm:$0xf] %v244
      %249 = vst [vmem:[#allocation2 + $0x70] sm:$0xf] %v245
      %s250 = sadd.s32 %s175, 5
      %s251 = sld [smem:[#allocation4 + %s250]]
      %s252 = scalar_lea.vmem [#allocation8], %s251
      %v253 = vld [vmem:[%s252] sm:$0xff]
      %v254 = vld [vmem:[%s252 + $0x8] sm:$0xff]
      %v255 = vpack.c.bf16 %v254, %v253
      %v257 = vunpack.c.l.b16 %v255
      %v258 = vunpack.c.h.b16 %v255
      %v259 = vpack.c.b16 %v257, %v257
      %v260 = vpack.c.b16 %v258, %v258
      %263 = vst [vmem:[#allocation2 + $0x7c] sm:$0xf] %v259
      %264 = vst [vmem:[#allocation2 + $0x88] sm:$0xf] %v260
      %s265 = sadd.s32 %s175, 6
      %s266 = sld [smem:[#allocation4 + %s265]]
      %s267 = scalar_lea.vmem [#allocation8], %s266
      %v268 = vld [vmem:[%s267] sm:$0xff]
      %v269 = vld [vmem:[%s267 + $0x8] sm:$0xff]
      %v270 = vpack.c.bf16 %v269, %v268
      %v272 = vunpack.c.l.b16 %v270
      %v273 = vunpack.c.h.b16 %v270
      %v274 = vpack.c.b16 %v272, %v272
      %v275 = vpack.c.b16 %v273, %v273
      %278 = vst [vmem:[#allocation2 + $0x94] sm:$0xf] %v274
      %279 = vst [vmem:[#allocation2 + $0xa0] sm:$0xf] %v275
      %s280 = sadd.s32 %s175, 7
      %s281 = sld [smem:[#allocation4 + %s280]]
      %s282 = scalar_lea.vmem [#allocation8], %s281
      %v283 = vld [vmem:[%s282] sm:$0xff]
      %v284 = vld [vmem:[%s282 + $0x8] sm:$0xff]
      %v285 = vpack.c.bf16 %v284, %v283
      %v287 = vunpack.c.l.b16 %v285
      %v288 = vunpack.c.h.b16 %v285
      %v289 = vpack.c.b16 %v287, %v287
      %v290 = vpack.c.b16 %v288, %v288
      %293 = vst [vmem:[#allocation2 + $0xac] sm:$0xf] %v289
      %294 = vst [vmem:[#allocation2 + $0xb8] sm:$0xf] %v290
      %s295 = sadd.s32 %s173, 2
      %s296 = smul.u32 %s295, 8
      %s297 = sld [smem:[#allocation4 + %s296]]
      %s298 = scalar_lea.vmem [#allocation8], %s297
      %v299 = vld [vmem:[%s298] sm:$0xff]
      %v300 = vld [vmem:[%s298 + $0x8] sm:$0xff]
      %v301 = vpack.c.bf16 %v300, %v299
      %v303 = vunpack.c.l.b16 %v301
      %v304 = vunpack.c.h.b16 %v301
      %v305 = vpack.c.b16 %v303, %v303
      %v306 = vpack.c.b16 %v304, %v304
      %309 = vst [vmem:[#allocation2 + $0x8] sm:$0xf] %v305
      %310 = vst [vmem:[#allocation2 + $0x14] sm:$0xf] %v306
      %s311 = sadd.s32 %s296, 1
      %s312 = sld [smem:[#allocation4 + %s311]]
      %s313 = scalar_lea.vmem [#allocation8], %s312
      %v314 = vld [vmem:[%s313] sm:$0xff]
      %v315 = vld [vmem:[%s313 + $0x8] sm:$0xff]
      %v316 = vpack.c.bf16 %v315, %v314
      %v318 = vunpack.c.l.b16 %v316
      %v319 = vunpack.c.h.b16 %v316
      %v320 = vpack.c.b16 %v318, %v318
      %v321 = vpack.c.b16 %v319, %v319
      %324 = vst [vmem:[#allocation2 + $0x20] sm:$0xf] %v320
      %325 = vst [vmem:[#allocation2 + $0x2c] sm:$0xf] %v321
      %s326 = sadd.s32 %s296, 2
      %s327 = sld [smem:[#allocation4 + %s326]]
      %s328 = scalar_lea.vmem [#allocation8], %s327
      %v329 = vld [vmem:[%s328] sm:$0xff]
      %v330 = vld [vmem:[%s328 + $0x8] sm:$0xff]
      %v331 = vpack.c.bf16 %v330, %v329
      %v333 = vunpack.c.l.b16 %v331
      %v334 = vunpack.c.h.b16 %v331
      %v335 = vpack.c.b16 %v333, %v333
      %v336 = vpack.c.b16 %v334, %v334
      %339 = vst [vmem:[#allocation2 + $0x38] sm:$0xf] %v335
      %340 = vst [vmem:[#allocation2 + $0x44] sm:$0xf] %v336
      %s341 = sadd.s32 %s296, 3
      %s342 = sld [smem:[#allocation4 + %s341]]
      %s343 = scalar_lea.vmem [#allocation8], %s342
      %v344 = vld [vmem:[%s343] sm:$0xff]
      %v345 = vld [vmem:[%s343 + $0x8] sm:$0xff]
      %v346 = vpack.c.bf16 %v345, %v344
      %v348 = vunpack.c.l.b16 %v346
      %v349 = vunpack.c.h.b16 %v346
      %v350 = vpack.c.b16 %v348, %v348
      %v351 = vpack.c.b16 %v349, %v349
      %354 = vst [vmem:[#allocation2 + $0x50] sm:$0xf] %v350
      %355 = vst [vmem:[#allocation2 + $0x5c] sm:$0xf] %v351
      %s356 = sadd.s32 %s296, 4
      %s357 = sld [smem:[#allocation4 + %s356]]
      %s358 = scalar_lea.vmem [#allocation8], %s357
      %v359 = vld [vmem:[%s358] sm:$0xff]
      %v360 = vld [vmem:[%s358 + $0x8] sm:$0xff]
      %v361 = vpack.c.bf16 %v360, %v359
      %v363 = vunpack.c.l.b16 %v361
      %v364 = vunpack.c.h.b16 %v361
      %v365 = vpack.c.b16 %v363, %v363
      %v366 = vpack.c.b16 %v364, %v364
      %369 = vst [vmem:[#allocation2 + $0x68] sm:$0xf] %v365
      %370 = vst [vmem:[#allocation2 + $0x74] sm:$0xf] %v366
      %s371 = sadd.s32 %s296, 5
      %s372 = sld [smem:[#allocation4 + %s371]]
      %s373 = scalar_lea.vmem [#allocation8], %s372
      %v374 = vld [vmem:[%s373] sm:$0xff]
      %v375 = vld [vmem:[%s373 + $0x8] sm:$0xff]
      %v376 = vpack.c.bf16 %v375, %v374
      %v378 = vunpack.c.l.b16 %v376
      %v379 = vunpack.c.h.b16 %v376
      %v380 = vpack.c.b16 %v378, %v378
      %v381 = vpack.c.b16 %v379, %v379
      %384 = vst [vmem:[#allocation2 + $0x80] sm:$0xf] %v380
      %385 = vst [vmem:[#allocation2 + $0x8c] sm:$0xf] %v381
      %s386 = sadd.s32 %s296, 6
      %s387 = sld [smem:[#allocation4 + %s386]]
      %s388 = scalar_lea.vmem [#allocation8], %s387
      %v389 = vld [vmem:[%s388] sm:$0xff]
      %v390 = vld [vmem:[%s388 + $0x8] sm:$0xff]
      %v391 = vpack.c.bf16 %v390, %v389
      %v393 = vunpack.c.l.b16 %v391
      %v394 = vunpack.c.h.b16 %v391
      %v395 = vpack.c.b16 %v393, %v393
      %v396 = vpack.c.b16 %v394, %v394
      %399 = vst [vmem:[#allocation2 + $0x98] sm:$0xf] %v395
      %400 = vst [vmem:[#allocation2 + $0xa4] sm:$0xf] %v396
      %s401 = sadd.s32 %s296, 7
      %s402 = sld [smem:[#allocation4 + %s401]]
      %s403 = scalar_lea.vmem [#allocation8], %s402
      %v404 = vld [vmem:[%s403] sm:$0xff]
      %v405 = vld [vmem:[%s403 + $0x8] sm:$0xff]
      %v406 = vpack.c.bf16 %v405, %v404
      %v408 = vunpack.c.l.b16 %v406
      %v409 = vunpack.c.h.b16 %v406
      %v410 = vpack.c.b16 %v408, %v408
      %v411 = vpack.c.b16 %v409, %v409
      %414 = vst [vmem:[#allocation2 + $0xb0] sm:$0xf] %v410
      %415 = vst [vmem:[#allocation2 + $0xbc] sm:$0xf] %v411
    $region25: #{tpu_custom_call.1} parent=1 // pred_fallthru
      _
    %v416 = vld [vmem:[#allocation5] sm:$0xf]
    %v417 = vld [vmem:[#allocation5 + $0x4] sm:$0xf]
    %v418 = vld [vmem:[#allocation5 + $0x8] sm:$0xf]
    %v419 = vld [vmem:[#allocation5 + $0xc] sm:$0xf]
    %v420 = vld [vmem:[#allocation5 + $0x10] sm:$0xf]
    %v421 = vld [vmem:[#allocation5 + $0x14] sm:$0xf]
    %v422 = vld [vmem:[#allocation5 + $0x18] sm:$0xf]
    %v423 = vld [vmem:[#allocation5 + $0x1c] sm:$0xf]
    %v424 = vld [vmem:[#allocation5 + $0x20] sm:$0xf]
    %v425 = vld [vmem:[#allocation5 + $0x24] sm:$0xf]
    %v426 = vld [vmem:[#allocation5 + $0x28] sm:$0xf]
    %v427 = vld [vmem:[#allocation5 + $0x2c] sm:$0xf]
    %v428 = vld [vmem:[#allocation5 + $0x30] sm:$0xf]
    %v429 = vld [vmem:[#allocation5 + $0x34] sm:$0xf]
    %v430 = vld [vmem:[#allocation5 + $0x38] sm:$0xf]
    %v431 = vld [vmem:[#allocation5 + $0x3c] sm:$0xf]
    %v432 = vld [vmem:[#allocation5 + $0x40] sm:$0xf]
    %v433 = vld [vmem:[#allocation5 + $0x44] sm:$0xf]
    %v434 = vld [vmem:[#allocation5 + $0x48] sm:$0xf]
    %v435 = vld [vmem:[#allocation5 + $0x4c] sm:$0xf]
    %v436 = vld [vmem:[#allocation5 + $0x50] sm:$0xf]
    %v437 = vld [vmem:[#allocation5 + $0x54] sm:$0xf]
    %v438 = vld [vmem:[#allocation5 + $0x58] sm:$0xf]
    %v439 = vld [vmem:[#allocation5 + $0x5c] sm:$0xf]
    %v440 = vld [vmem:[#allocation2] sm:$0xff]
    %v441 = vld [vmem:[#allocation2 + $0x8] sm:$0xf]
    %v442 = vld [vmem:[#allocation2 + $0xc] sm:$0xff]
    %v443 = vld [vmem:[#allocation2 + $0x14] sm:$0xf]
    %v444 = vld [vmem:[#allocation2 + $0x18] sm:$0xff]
    %v445 = vld [vmem:[#allocation2 + $0x20] sm:$0xf]
    %v446 = vld [vmem:[#allocation2 + $0x24] sm:$0xff]
    %v447 = vld [vmem:[#allocation2 + $0x2c] sm:$0xf]
    %v448 = vld [vmem:[#allocation2 + $0x30] sm:$0xff]
    %v449 = vld [vmem:[#allocation2 + $0x38] sm:$0xf]
    %v450 = vld [vmem:[#allocation2 + $0x3c] sm:$0xff]
    %v451 = vld [vmem:[#allocation2 + $0x44] sm:$0xf]
    %v452 = vld [vmem:[#allocation2 + $0x48] sm:$0xff]
    %v453 = vld [vmem:[#allocation2 + $0x50] sm:$0xf]
    %v454 = vld [vmem:[#allocation2 + $0x54] sm:$0xff]
    %v455 = vld [vmem:[#allocation2 + $0x5c] sm:$0xf]
    %v456 = vld [vmem:[#allocation2 + $0x60] sm:$0xff]
    %v457 = vld [vmem:[#allocation2 + $0x68] sm:$0xf]
    %v458 = vld [vmem:[#allocation2 + $0x6c] sm:$0xff]
    %v459 = vld [vmem:[#allocation2 + $0x74] sm:$0xf]
    %v460 = vld [vmem:[#allocation2 + $0x78] sm:$0xff]
    %v461 = vld [vmem:[#allocation2 + $0x80] sm:$0xf]
    %v462 = vld [vmem:[#allocation2 + $0x84] sm:$0xff]
    %v463 = vld [vmem:[#allocation2 + $0x8c] sm:$0xf]
    %v464 = vld [vmem:[#allocation2 + $0x90] sm:$0xff]
    %v465 = vld [vmem:[#allocation2 + $0x98] sm:$0xf]
    %v466 = vld [vmem:[#allocation2 + $0x9c] sm:$0xff]
    %v467 = vld [vmem:[#allocation2 + $0xa4] sm:$0xf]
    %v468 = vld [vmem:[#allocation2 + $0xa8] sm:$0xff]
    %v469 = vld [vmem:[#allocation2 + $0xb0] sm:$0xf]
    %v470 = vld [vmem:[#allocation2 + $0xb4] sm:$0xff]
    %v471 = vld [vmem:[#allocation2 + $0xbc] sm:$0xf]
    %v472 = vld [vmem:[%s3] sm:$0x7]
    %v474 = vlaneseq
    %v475 = vshrl.u32 %v474, 7
    %v476 = vsub.s32 0, %v475
    %v477 = vrot.slane %v472, %v476
    %v478 = vlaneseq
    %v479 = vshrl.u32 %v478, 7
    %v480 = vsub.s32 1, %v479
    %v481 = vrot.slane %v472, %v480
    %v482 = vlaneseq
    %v483 = vshrl.u32 %v482, 7
    %v484 = vsub.s32 2, %v483
    %v485 = vrot.slane %v472, %v484
    %v513 = vunpack.c.l.b16 %v416
    %v514 = vunpack.c.l.b16 %v417
    %v515 = vunpack.c.l.b16 %v418
    %v516 = vunpack.c.l.b16 %v419
    %v517 = vunpack.c.l.b16 %v420
    %v518 = vunpack.c.l.b16 %v421
    %v519 = vunpack.c.l.b16 %v422
    %v520 = vunpack.c.l.b16 %v423
    %v521 = vunpack.c.l.b16 %v424
    %v522 = vunpack.c.l.b16 %v425
    %v523 = vunpack.c.l.b16 %v426
    %v524 = vunpack.c.l.b16 %v427
    %v525 = vunpack.c.l.b16 %v428
    %v526 = vunpack.c.l.b16 %v429
    %v527 = vunpack.c.l.b16 %v430
    %v528 = vunpack.c.l.b16 %v431
    %v529 = vunpack.c.l.b16 %v432
    %v530 = vunpack.c.l.b16 %v433
    %v531 = vunpack.c.l.b16 %v434
    %v532 = vunpack.c.l.b16 %v435
    %v533 = vunpack.c.l.b16 %v436
    %v534 = vunpack.c.l.b16 %v437
    %v535 = vunpack.c.l.b16 %v438
    %v536 = vunpack.c.l.b16 %v439
    %v537 = vpack.c.b16 %v514, %v513
    %v538 = vpack.c.b16 %v516, %v515
    %v539 = vpack.c.b16 %v518, %v517
    %v540 = vpack.c.b16 %v520, %v519
    %v541 = vpack.c.b16 %v522, %v521
    %v542 = vpack.c.b16 %v524, %v523
    %v543 = vpack.c.b16 %v526, %v525
    %v544 = vpack.c.b16 %v528, %v527
    %v545 = vpack.c.b16 %v530, %v529
    %v546 = vpack.c.b16 %v532, %v531
    %v547 = vpack.c.b16 %v534, %v533
    %v548 = vpack.c.b16 %v536, %v535
    %v593 = vunpack.c.l.b16 %v440
    %v594 = vunpack.c.h.b16 %v440
    %v595 = vunpack.c.l.b16 %v441
    %v596 = vunpack.c.l.b16 %v442
    %v597 = vunpack.c.h.b16 %v442
    %v598 = vunpack.c.l.b16 %v443
    %v599 = vunpack.c.l.b16 %v444
    %v600 = vunpack.c.h.b16 %v444
    %v601 = vunpack.c.l.b16 %v445
    %v602 = vunpack.c.l.b16 %v446
    %v603 = vunpack.c.h.b16 %v446
    %v604 = vunpack.c.l.b16 %v447
    %v605 = vunpack.c.l.b16 %v448
    %v606 = vunpack.c.h.b16 %v448
    %v607 = vunpack.c.l.b16 %v449
    %v608 = vunpack.c.l.b16 %v450
    %v609 = vunpack.c.h.b16 %v450
    %v610 = vunpack.c.l.b16 %v451
    %v611 = vunpack.c.l.b16 %v452
    %v612 = vunpack.c.h.b16 %v452
    %v613 = vunpack.c.l.b16 %v453
    %v614 = vunpack.c.l.b16 %v454
    %v615 = vunpack.c.h.b16 %v454
    %v616 = vunpack.c.l.b16 %v455
    %v617 = vunpack.c.l.b16 %v456
    %v618 = vunpack.c.h.b16 %v456
    %v619 = vunpack.c.l.b16 %v457
    %v620 = vunpack.c.l.b16 %v458
    %v621 = vunpack.c.h.b16 %v458
    %v622 = vunpack.c.l.b16 %v459
    %v623 = vunpack.c.l.b16 %v460
    %v624 = vunpack.c.h.b16 %v460
    %v625 = vunpack.c.l.b16 %v461
    %v626 = vunpack.c.l.b16 %v462
    %v627 = vunpack.c.h.b16 %v462
    %v628 = vunpack.c.l.b16 %v463
    %v629 = vunpack.c.l.b16 %v464
    %v630 = vunpack.c.h.b16 %v464
    %v631 = vunpack.c.l.b16 %v465
    %v632 = vunpack.c.l.b16 %v466
    %v633 = vunpack.c.h.b16 %v466
    %v634 = vunpack.c.l.b16 %v467
    %v635 = vunpack.c.l.b16 %v468
    %v636 = vunpack.c.h.b16 %v468
    %v637 = vunpack.c.l.b16 %v469
    %v638 = vunpack.c.l.b16 %v470
    %v639 = vunpack.c.h.b16 %v470
    %v640 = vunpack.c.l.b16 %v471
    %v641 = vpack.c.b16 %v596, %v593
    %v642 = vpack.c.b16 %v597, %v594
    %v643 = vpack.c.b16 %v598, %v595
    %v644 = vpack.c.b16 %v602, %v599
    %v645 = vpack.c.b16 %v603, %v600
    %v646 = vpack.c.b16 %v604, %v601
    %v647 = vpack.c.b16 %v608, %v605
    %v648 = vpack.c.b16 %v609, %v606
    %v649 = vpack.c.b16 %v610, %v607
    %v650 = vpack.c.b16 %v614, %v611
    %v651 = vpack.c.b16 %v615, %v612
    %v652 = vpack.c.b16 %v616, %v613
    %v653 = vpack.c.b16 %v620, %v617
    %v654 = vpack.c.b16 %v621, %v618
    %v655 = vpack.c.b16 %v622, %v619
    %v656 = vpack.c.b16 %v626, %v623
    %v657 = vpack.c.b16 %v627, %v624
    %v658 = vpack.c.b16 %v628, %v625
    %v659 = vpack.c.b16 %v632, %v629
    %v660 = vpack.c.b16 %v633, %v630
    %v661 = vpack.c.b16 %v634, %v631
    %v662 = vpack.c.b16 %v638, %v635
    %v663 = vpack.c.b16 %v639, %v636
    %v664 = vpack.c.b16 %v640, %v637
    %689 = vmatprep.subr.bf16.mxu0 %v663
    %690 = vmatpush1.bf16.msra.mxu0 %v662
    %691 = vmatprep.subr.bf16.mxu0 %v660
    %692 = vmatpush1.bf16.msra.mxu0 %v659
    %693 = vmatprep.subr.bf16.mxu0 %v657
    %694 = vmatpush1.bf16.msra.mxu0 %v656
    %695 = vmatprep.subr.bf16.mxu0 %v654
    %696 = vmatpush1.bf16.msra.mxu0 %v653
    %697 = vmatprep.subr.bf16.mxu0 %v651
    %698 = vmatpush1.bf16.msra.mxu0 %v650
    %699 = vmatprep.subr.bf16.mxu0 %v648
    %700 = vmatpush1.bf16.msra.mxu0 %v647
    %701 = vmatprep.subr.bf16.mxu0 %v645
    %702 = vmatpush1.bf16.msra.mxu0 %v644
    %703 = vmatprep.subr.bf16.mxu0 %v642
    %704 = vmatpush1.bf16.msra.mxu0 %v641
    %705 = vmatprep.subr.bf16.mxu0 0
    %706 = vmatpush2.bf16.msra.mxu0 0
    %707 = vmatprep.subr.bf16.mxu0 0
    %708 = vmatpush2.bf16.msra.mxu0 0
    %709 = vmatprep.subr.bf16.mxu0 0
    %710 = vmatpush2.bf16.msra.mxu0 0
    %711 = vmatprep.subr.bf16.mxu0 0
    %712 = vmatpush2.bf16.msra.mxu0 0
    %713 = vmatprep.subr.bf16.mxu0 0
    %714 = vmatpush2.bf16.msra.mxu0 0
    %715 = vmatprep.subr.bf16.mxu0 0
    %716 = vmatpush2.bf16.msra.mxu0 0
    %717 = vmatprep.subr.bf16.mxu0 0
    %718 = vmatpush2.bf16.msra.mxu0 0
    %719 = vmatprep.subr.bf16.mxu0 0
    %720 = vmatpush2.bf16.msra.mxu0 0
    %721 = vmatprep.mubr.bf16.mxu0 0
    %722 = vmatmul.mubr.bf16.gmra.mxu0 %v537
    %v723 = vpop.f32.mrf.mxu0
    %v724 = vadd.f32 %v477, %v723
    %v725 = vpop.f32.mrf.mxu0
    %v726 = vadd.f32 %v481, %v725
    %v727 = vpop.f32.mrf.mxu0
    %v728 = vadd.f32 %v477, %v727
    %v729 = vpop.f32.mrf.mxu0
    %v730 = vadd.f32 %v481, %v729
    %731 = vmatprep.mubr.bf16.mxu0 0
    %732 = vmatmul.mubr.bf16.gmra.mxu0 %v538
    %v733 = vpop.f32.mrf.mxu0
    %v734 = vadd.f32 %v477, %v733
    %v735 = vpop.f32.mrf.mxu0
    %v736 = vadd.f32 %v481, %v735
    %v737 = vpop.f32.mrf.mxu0
    %v738 = vadd.f32 %v477, %v737
    %v739 = vpop.f32.mrf.mxu0
    %v740 = vadd.f32 %v481, %v739
    %741 = vmatprep.mubr.bf16.mxu0 0
    %742 = vmatmul.mubr.bf16.gmra.mxu0 %v539
    %v743 = vpop.f32.mrf.mxu0
    %v744 = vadd.f32 %v477, %v743
    %v745 = vpop.f32.mrf.mxu0
    %v746 = vadd.f32 %v481, %v745
    %v747 = vpop.f32.mrf.mxu0
    %v748 = vadd.f32 %v477, %v747
    %v749 = vpop.f32.mrf.mxu0
    %v750 = vadd.f32 %v481, %v749
    %751 = vmatprep.mubr.bf16.mxu0 0
    %752 = vmatmul.mubr.bf16.gmra.mxu0 %v540
    %v753 = vpop.f32.mrf.mxu0
    %v754 = vadd.f32 %v477, %v753
    %v755 = vpop.f32.mrf.mxu0
    %v756 = vadd.f32 %v481, %v755
    %v757 = vpop.f32.mrf.mxu0
    %v758 = vadd.f32 %v477, %v757
    %v759 = vpop.f32.mrf.mxu0
    %v760 = vadd.f32 %v481, %v759
    %761 = vmatprep.mubr.bf16.mxu0 0
    %762 = vmatmul.mubr.bf16.gmra.mxu0 %v541
    %v763 = vpop.f32.mrf.mxu0
    %v764 = vadd.f32 %v477, %v763
    %v765 = vpop.f32.mrf.mxu0
    %v766 = vadd.f32 %v481, %v765
    %v767 = vpop.f32.mrf.mxu0
    %v768 = vadd.f32 %v477, %v767
    %v769 = vpop.f32.mrf.mxu0
    %v770 = vadd.f32 %v481, %v769
    %771 = vmatprep.mubr.bf16.mxu0 0
    %772 = vmatmul.mubr.bf16.gmra.mxu0 %v542
    %v773 = vpop.f32.mrf.mxu0
    %v774 = vadd.f32 %v477, %v773
    %v775 = vpop.f32.mrf.mxu0
    %v776 = vadd.f32 %v481, %v775
    %v777 = vpop.f32.mrf.mxu0
    %v778 = vadd.f32 %v477, %v777
    %v779 = vpop.f32.mrf.mxu0
    %v780 = vadd.f32 %v481, %v779
    %781 = vmatprep.mubr.bf16.mxu0 0
    %782 = vmatmul.mubr.bf16.gmra.mxu0 %v543
    %v783 = vpop.f32.mrf.mxu0
    %v784 = vadd.f32 %v477, %v783
    %v785 = vpop.f32.mrf.mxu0
    %v786 = vadd.f32 %v481, %v785
    %v787 = vpop.f32.mrf.mxu0
    %v788 = vadd.f32 %v477, %v787
    %v789 = vpop.f32.mrf.mxu0
    %v790 = vadd.f32 %v481, %v789
    %791 = vmatprep.mubr.bf16.mxu0 0
    %792 = vmatmul.mubr.bf16.gmra.mxu0 %v544
    %v793 = vpop.f32.mrf.mxu0
    %v794 = vadd.f32 %v477, %v793
    %v795 = vpop.f32.mrf.mxu0
    %v796 = vadd.f32 %v481, %v795
    %v797 = vpop.f32.mrf.mxu0
    %v798 = vadd.f32 %v477, %v797
    %v799 = vpop.f32.mrf.mxu0
    %v800 = vadd.f32 %v481, %v799
    %801 = vmatprep.mubr.bf16.mxu0 0
    %802 = vmatmul.mubr.bf16.gmra.mxu0 %v545
    %v803 = vpop.f32.mrf.mxu0
    %v804 = vadd.f32 %v477, %v803
    %v805 = vpop.f32.mrf.mxu0
    %v806 = vadd.f32 %v481, %v805
    %v807 = vpop.f32.mrf.mxu0
    %v808 = vadd.f32 %v477, %v807
    %v809 = vpop.f32.mrf.mxu0
    %v810 = vadd.f32 %v481, %v809
    %811 = vmatprep.mubr.bf16.mxu0 0
    %812 = vmatmul.mubr.bf16.gmra.mxu0 %v546
    %v813 = vpop.f32.mrf.mxu0
    %v814 = vadd.f32 %v477, %v813
    %v815 = vpop.f32.mrf.mxu0
    %v816 = vadd.f32 %v481, %v815
    %v817 = vpop.f32.mrf.mxu0
    %v818 = vadd.f32 %v477, %v817
    %v819 = vpop.f32.mrf.mxu0
    %v820 = vadd.f32 %v481, %v819
    %821 = vmatprep.mubr.bf16.mxu0 0
    %822 = vmatmul.mubr.bf16.gmra.mxu0 %v547
    %v823 = vpop.f32.mrf.mxu0
    %v824 = vadd.f32 %v477, %v823
    %v825 = vpop.f32.mrf.mxu0
    %v826 = vadd.f32 %v481, %v825
    %v827 = vpop.f32.mrf.mxu0
    %v828 = vadd.f32 %v477, %v827
    %v829 = vpop.f32.mrf.mxu0
    %v830 = vadd.f32 %v481, %v829
    %831 = vmatprep.mubr.bf16.mxu0 0
    %832 = vmatmul.mubr.bf16.gmra.mxu0 %v548
    %v833 = vpop.f32.mrf.mxu0
    %v834 = vadd.f32 %v477, %v833
    %v835 = vpop.f32.mrf.mxu0
    %v836 = vadd.f32 %v481, %v835
    %v837 = vpop.f32.mrf.mxu0
    %v838 = vadd.f32 %v477, %v837
    %v839 = vpop.f32.mrf.mxu0
    %v840 = vadd.f32 %v481, %v839
    %841 = vdwg.mxu0
    %842 = vmatprep.subr.bf16.mxu0 0
    %843 = vmatpush1.bf16.msra.mxu0 %v664
    %844 = vmatprep.subr.bf16.mxu0 0
    %845 = vmatpush1.bf16.msra.mxu0 %v661
    %846 = vmatprep.subr.bf16.mxu0 0
    %847 = vmatpush1.bf16.msra.mxu0 %v658
    %848 = vmatprep.subr.bf16.mxu0 0
    %849 = vmatpush1.bf16.msra.mxu0 %v655
    %850 = vmatprep.subr.bf16.mxu0 0
    %851 = vmatpush1.bf16.msra.mxu0 %v652
    %852 = vmatprep.subr.bf16.mxu0 0
    %853 = vmatpush1.bf16.msra.mxu0 %v649
    %854 = vmatprep.subr.bf16.mxu0 0
    %855 = vmatpush1.bf16.msra.mxu0 %v646
    %856 = vmatprep.subr.bf16.mxu0 0
    %857 = vmatpush1.bf16.msra.mxu0 %v643
    %858 = vmatprep.subr.bf16.mxu0 0
    %859 = vmatpush2.bf16.msra.mxu0 0
    %860 = vmatprep.subr.bf16.mxu0 0
    %861 = vmatpush2.bf16.msra.mxu0 0
    %862 = vmatprep.subr.bf16.mxu0 0
    %863 = vmatpush2.bf16.msra.mxu0 0
    %864 = vmatprep.subr.bf16.mxu0 0
    %865 = vmatpush2.bf16.msra.mxu0 0
    %866 = vmatprep.subr.bf16.mxu0 0
    %867 = vmatpush2.bf16.msra.mxu0 0
    %868 = vmatprep.subr.bf16.mxu0 0
    %869 = vmatpush2.bf16.msra.mxu0 0
    %870 = vmatprep.subr.bf16.mxu0 0
    %871 = vmatpush2.bf16.msra.mxu0 0
    %872 = vmatprep.subr.bf16.mxu0 0
    %873 = vmatpush2.bf16.msra.mxu0 0
    %874 = vmatprep.mubr.bf16.mxu0 0
    %875 = vmatmul.mubr.bf16.gmra.mxu0 %v537
    %v876 = vpop.f32.mrf.mxu0
    %v877 = vadd.f32 %v485, %v876
    %v878 = vpop.f32.mrf.mxu0
    %v879 = vpop.f32.mrf.mxu0
    %v880 = vadd.f32 %v485, %v879
    %v881 = vpop.f32.mrf.mxu0
    %882 = vmatprep.mubr.bf16.mxu0 0
    %883 = vmatmul.mubr.bf16.gmra.mxu0 %v538
    %v884 = vpop.f32.mrf.mxu0
    %v885 = vadd.f32 %v485, %v884
    %v886 = vpop.f32.mrf.mxu0
    %v887 = vpop.f32.mrf.mxu0
    %v888 = vadd.f32 %v485, %v887
    %v889 = vpop.f32.mrf.mxu0
    %890 = vmatprep.mubr.bf16.mxu0 0
    %891 = vmatmul.mubr.bf16.gmra.mxu0 %v539
    %v892 = vpop.f32.mrf.mxu0
    %v893 = vadd.f32 %v485, %v892
    %v894 = vpop.f32.mrf.mxu0
    %v895 = vpop.f32.mrf.mxu0
    %v896 = vadd.f32 %v485, %v895
    %v897 = vpop.f32.mrf.mxu0
    %898 = vmatprep.mubr.bf16.mxu0 0
    %899 = vmatmul.mubr.bf16.gmra.mxu0 %v540
    %v900 = vpop.f32.mrf.mxu0
    %v901 = vadd.f32 %v485, %v900
    %v902 = vpop.f32.mrf.mxu0
    %v903 = vpop.f32.mrf.mxu0
    %v904 = vadd.f32 %v485, %v903
    %v905 = vpop.f32.mrf.mxu0
    %906 = vmatprep.mubr.bf16.mxu0 0
    %907 = vmatmul.mubr.bf16.gmra.mxu0 %v541
    %v908 = vpop.f32.mrf.mxu0
    %v909 = vadd.f32 %v485, %v908
    %v910 = vpop.f32.mrf.mxu0
    %v911 = vpop.f32.mrf.mxu0
    %v912 = vadd.f32 %v485, %v911
    %v913 = vpop.f32.mrf.mxu0
    %914 = vmatprep.mubr.bf16.mxu0 0
    %915 = vmatmul.mubr.bf16.gmra.mxu0 %v542
    %v916 = vpop.f32.mrf.mxu0
    %v917 = vadd.f32 %v485, %v916
    %v918 = vpop.f32.mrf.mxu0
    %v919 = vpop.f32.mrf.mxu0
    %v920 = vadd.f32 %v485, %v919
    %v921 = vpop.f32.mrf.mxu0
    %922 = vmatprep.mubr.bf16.mxu0 0
    %923 = vmatmul.mubr.bf16.gmra.mxu0 %v543
    %v924 = vpop.f32.mrf.mxu0
    %v925 = vadd.f32 %v485, %v924
    %v926 = vpop.f32.mrf.mxu0
    %v927 = vpop.f32.mrf.mxu0
    %v928 = vadd.f32 %v485, %v927
    %v929 = vpop.f32.mrf.mxu0
    %930 = vmatprep.mubr.bf16.mxu0 0
    %931 = vmatmul.mubr.bf16.gmra.mxu0 %v544
    %v932 = vpop.f32.mrf.mxu0
    %v933 = vadd.f32 %v485, %v932
    %v934 = vpop.f32.mrf.mxu0
    %v935 = vpop.f32.mrf.mxu0
    %v936 = vadd.f32 %v485, %v935
    %v937 = vpop.f32.mrf.mxu0
    %938 = vmatprep.mubr.bf16.mxu0 0
    %939 = vmatmul.mubr.bf16.gmra.mxu0 %v545
    %v940 = vpop.f32.mrf.mxu0
    %v941 = vadd.f32 %v485, %v940
    %v942 = vpop.f32.mrf.mxu0
    %v943 = vpop.f32.mrf.mxu0
    %v944 = vadd.f32 %v485, %v943
    %v945 = vpop.f32.mrf.mxu0
    %946 = vmatprep.mubr.bf16.mxu0 0
    %947 = vmatmul.mubr.bf16.gmra.mxu0 %v546
    %v948 = vpop.f32.mrf.mxu0
    %v949 = vadd.f32 %v485, %v948
    %v950 = vpop.f32.mrf.mxu0
    %v951 = vpop.f32.mrf.mxu0
    %v952 = vadd.f32 %v485, %v951
    %v953 = vpop.f32.mrf.mxu0
    %954 = vmatprep.mubr.bf16.mxu0 0
    %955 = vmatmul.mubr.bf16.gmra.mxu0 %v547
    %v956 = vpop.f32.mrf.mxu0
    %v957 = vadd.f32 %v485, %v956
    %v958 = vpop.f32.mrf.mxu0
    %v959 = vpop.f32.mrf.mxu0
    %v960 = vadd.f32 %v485, %v959
    %v961 = vpop.f32.mrf.mxu0
    %962 = vmatprep.mubr.bf16.mxu0 0
    %963 = vmatmul.mubr.bf16.gmra.mxu0 %v548
    %v964 = vpop.f32.mrf.mxu0
    %v965 = vadd.f32 %v485, %v964
    %v966 = vpop.f32.mrf.mxu0
    %v967 = vpop.f32.mrf.mxu0
    %v968 = vadd.f32 %v485, %v967
    %v969 = vpop.f32.mrf.mxu0
    %970 = vdwg.mxu0
    %971 = vst [vmem:[#allocation10] sm:$0xff] %v724
    %972 = vst [vmem:[#allocation10 + $0x8] sm:$0xff] %v726
    %973 = vst [vmem:[#allocation10 + $0x10] sm:$0xff] %v877
    %974 = vst [vmem:[#allocation10 + $0x18] sm:$0xff] %v728
    %975 = vst [vmem:[#allocation10 + $0x20] sm:$0xff] %v730
    %976 = vst [vmem:[#allocation10 + $0x28] sm:$0xff] %v880
    %977 = vst [vmem:[#allocation10 + $0x30] sm:$0xff] %v734
    %978 = vst [vmem:[#allocation10 + $0x38] sm:$0xff] %v736
    %979 = vst [vmem:[#allocation10 + $0x40] sm:$0xff] %v885
    %980 = vst [vmem:[#allocation10 + $0x48] sm:$0xff] %v738
    %981 = vst [vmem:[#allocation10 + $0x50] sm:$0xff] %v740
    %982 = vst [vmem:[#allocation10 + $0x58] sm:$0xff] %v888
    %983 = vst [vmem:[#allocation10 + $0x60] sm:$0xff] %v744
    %984 = vst [vmem:[#allocation10 + $0x68] sm:$0xff] %v746
    %985 = vst [vmem:[#allocation10 + $0x70] sm:$0xff] %v893
    %986 = vst [vmem:[#allocation10 + $0x78] sm:$0xff] %v748
    %987 = vst [vmem:[#allocation10 + $0x80] sm:$0xff] %v750
    %988 = vst [vmem:[#allocation10 + $0x88] sm:$0xff] %v896
    %989 = vst [vmem:[#allocation10 + $0x90] sm:$0xff] %v754
    %990 = vst [vmem:[#allocation10 + $0x98] sm:$0xff] %v756
    %991 = vst [vmem:[#allocation10 + $0xa0] sm:$0xff] %v901
    %992 = vst [vmem:[#allocation10 + $0xa8] sm:$0xff] %v758
    %993 = vst [vmem:[#allocation10 + $0xb0] sm:$0xff] %v760
    %994 = vst [vmem:[#allocation10 + $0xb8] sm:$0xff] %v904
    %995 = vst [vmem:[#allocation10 + $0xc0] sm:$0xff] %v764
    %996 = vst [vmem:[#allocation10 + $0xc8] sm:$0xff] %v766
    %997 = vst [vmem:[#allocation10 + $0xd0] sm:$0xff] %v909
    %998 = vst [vmem:[#allocation10 + $0xd8] sm:$0xff] %v768
    %999 = vst [vmem:[#allocation10 + $0xe0] sm:$0xff] %v770
    %1000 = vst [vmem:[#allocation10 + $0xe8] sm:$0xff] %v912
    %1001 = vst [vmem:[#allocation10 + $0xf0] sm:$0xff] %v774
    %1002 = vst [vmem:[#allocation10 + $0xf8] sm:$0xff] %v776
    %1003 = vst [vmem:[#allocation10 + $0x100] sm:$0xff] %v917
    %1004 = vst [vmem:[#allocation10 + $0x108] sm:$0xff] %v778
    %1005 = vst [vmem:[#allocation10 + $0x110] sm:$0xff] %v780
    %1006 = vst [vmem:[#allocation10 + $0x118] sm:$0xff] %v920
    %1007 = vst [vmem:[#allocation10 + $0x120] sm:$0xff] %v784
    %1008 = vst [vmem:[#allocation10 + $0x128] sm:$0xff] %v786
    %1009 = vst [vmem:[#allocation10 + $0x130] sm:$0xff] %v925
    %1010 = vst [vmem:[#allocation10 + $0x138] sm:$0xff] %v788
    %1011 = vst [vmem:[#allocation10 + $0x140] sm:$0xff] %v790
    %1012 = vst [vmem:[#allocation10 + $0x148] sm:$0xff] %v928
    %1013 = vst [vmem:[#allocation10 + $0x150] sm:$0xff] %v794
    %1014 = vst [vmem:[#allocation10 + $0x158] sm:$0xff] %v796
    %1015 = vst [vmem:[#allocation10 + $0x160] sm:$0xff] %v933
    %1016 = vst [vmem:[#allocation10 + $0x168] sm:$0xff] %v798
    %1017 = vst [vmem:[#allocation10 + $0x170] sm:$0xff] %v800
    %1018 = vst [vmem:[#allocation10 + $0x178] sm:$0xff] %v936
    %1019 = vst [vmem:[#allocation10 + $0x180] sm:$0xff] %v804
    %1020 = vst [vmem:[#allocation10 + $0x188] sm:$0xff] %v806
    %1021 = vst [vmem:[#allocation10 + $0x190] sm:$0xff] %v941
    %1022 = vst [vmem:[#allocation10 + $0x198] sm:$0xff] %v808
    %1023 = vst [vmem:[#allocation10 + $0x1a0] sm:$0xff] %v810
    %1024 = vst [vmem:[#allocation10 + $0x1a8] sm:$0xff] %v944
    %1025 = vst [vmem:[#allocation10 + $0x1b0] sm:$0xff] %v814
    %1026 = vst [vmem:[#allocation10 + $0x1b8] sm:$0xff] %v816
    %1027 = vst [vmem:[#allocation10 + $0x1c0] sm:$0xff] %v949
    %1028 = vst [vmem:[#allocation10 + $0x1c8] sm:$0xff] %v818
    %1029 = vst [vmem:[#allocation10 + $0x1d0] sm:$0xff] %v820
    %1030 = vst [vmem:[#allocation10 + $0x1d8] sm:$0xff] %v952
    %1031 = vst [vmem:[#allocation10 + $0x1e0] sm:$0xff] %v824
    %1032 = vst [vmem:[#allocation10 + $0x1e8] sm:$0xff] %v826
    %1033 = vst [vmem:[#allocation10 + $0x1f0] sm:$0xff] %v957
    %1034 = vst [vmem:[#allocation10 + $0x1f8] sm:$0xff] %v828
    %1035 = vst [vmem:[#allocation10 + $0x200] sm:$0xff] %v830
    %1036 = vst [vmem:[#allocation10 + $0x208] sm:$0xff] %v960
    %1037 = vst [vmem:[#allocation10 + $0x210] sm:$0xff] %v834
    %1038 = vst [vmem:[#allocation10 + $0x218] sm:$0xff] %v836
    %1039 = vst [vmem:[#allocation10 + $0x220] sm:$0xff] %v965
    %1040 = vst [vmem:[#allocation10 + $0x228] sm:$0xff] %v838
    %1041 = vst [vmem:[#allocation10 + $0x230] sm:$0xff] %v840
    %1042 = vst [vmem:[#allocation10 + $0x238] sm:$0xff] %v968
    // Predicated region
    $region26: #{tpu_custom_call.1} parent=1 // pred_check
      _
    $region27: #{tpu_custom_call.1} parent=1 // pred_check_branch
      %1044 = sbr.rel (0) target = $region29
    $region28: #{tpu_custom_call.1} parent=1 // pred_region
      %s1046 = ssub.s32 9216, 9216
      %1047 = vsyncadd [#allocation7], %s1046
      %s1048 = sshll.u32 [#allocation10], 4
      %s1049 = int_to_ptr.vmem [resolvable:$true] %s1048
      %1054 = dma.vmem_to_hbm [thread:$0]  %s1049, 9216, %s4, [#allocation7], 384, 384, 24
    $region29: #{tpu_custom_call.1} parent=1 // pred_fallthru
      _
    // Predicated region
    $region30: #{tpu_custom_call.1} parent=1 // pred_check
      _
    $region31: #{tpu_custom_call.1} parent=1 // pred_check_branch
      %1056 = sbr.rel (0) target = $region33
    $region32: #{tpu_custom_call.1} parent=1 // pred_region
      %1057 = dma.done [#allocation7], 9216
    $region33: #{tpu_custom_call.1} parent=1 // pred_fallthru
      _
    %1058 = vsyncpa [#allocation6], 1
    %1059 = vsyncpa [#allocation9], 1
    %1060 = vsyncpa [#allocation7], 1

</llo_original>
